<compile_context>
chip_gen: v5e
topology: v5e:2x2
jax: 0.10.0
libtpu: 0.0.40
codegen_flags: <defaults>
</compile_context>

<pallas_src>
import jax
import jax.numpy as jnp
from jax.experimental import pallas as pl
from jax.experimental.pallas import tpu as pltpu

_LANES = 128


def _poly3_kernel(coef_ref, x_ref, o_ref):
    # coef_ref: SMEM (4,) float32 -> [a, b, c, d]
    # x_ref / o_ref: VMEM (block_rows, 128) tiles in the array's native dtype.
    a = coef_ref[0]
    b = coef_ref[1]
    c = coef_ref[2]
    d = coef_ref[3]
    # Cast to f32 on-chip (no extra HBM traffic); Horner form = 3 FMAs/elem on VPU,
    # fully hidden under DMA for this memory-bound kernel.
    x = x_ref[...].astype(jnp.float32)
    y = a + x * (b + x * (c + x * d))
    o_ref[...] = y.astype(o_ref.dtype)


def polynomial3(x, a, b, c, d, *, tile_rows=2048):
    """Elementwise cubic polynomial, matching Polynomial3.forward semantics."""
    orig_shape = x.shape
    dtype = x.dtype
    if not jnp.issubdtype(dtype, jnp.floating):
        # PyTorch would promote integer inputs to float; mirror that here.
        x = x.astype(jnp.float32)
        dtype = jnp.float32

    n = x.size
    x_flat = x.reshape(-1)
    coefs = jnp.stack([a, b, c, d]).astype(jnp.float32)

    def run_kernel(x2d):
        rows = x2d.shape[0]
        # Full-extent block for small inputs (allowed even if rows % 8 != 0),
        # otherwise a big 8-divisible tile; grid may not divide rows evenly
        # (Pallas drops OOB edge-block writes, which is safe for elementwise ops).
        block_rows = rows if rows <= tile_rows else tile_rows
        grid = (pl.cdiv(rows, block_rows),)

        # Double-buffered input + output budget, with slack; keeps large
        # user-chosen tiles compiling on v5e (16 MiB default scoped VMEM)
        # while staying well inside v7x's 64 MiB physical VMEM.
        block_bytes = block_rows * _LANES * jnp.dtype(dtype).itemsize
        vmem_limit = min(max(4 * block_bytes + (2 << 20), 16 << 20), 32 << 20)

        return pl.pallas_call(
            _poly3_kernel,
            out_shape=jax.ShapeDtypeStruct((rows, _LANES), dtype),
            grid_spec=pltpu.PrefetchScalarGridSpec(
                num_scalar_prefetch=0,
                grid=grid,
                in_specs=[
                    pl.BlockSpec(memory_space=pltpu.SMEM),                 # coefficients
                    pl.BlockSpec((block_rows, _LANES), lambda i: (i, 0)),  # x tile
                ],
                out_specs=pl.BlockSpec((block_rows, _LANES), lambda i: (i, 0)),
            ),
            compiler_params=pltpu.CompilerParams(
                dimension_semantics=("parallel",),
                vmem_limit_bytes=vmem_limit,
            ),
        )(coefs, x2d)

    n_body = (n // _LANES) * _LANES

    if n_body == n and n > 0:
        # Common case: flat length is a multiple of 128 -> no pad, no slice,
        # no extra HBM passes.
        out = run_kernel(x_flat.reshape(n // _LANES, _LANES)).reshape(orig_shape)
    elif n_body == 0:
        # Tiny (< 128 elements) or empty input: plain JAX, a kernel adds no value.
        y = coefs[0] + x_flat * (coefs[1] + x_flat * (coefs[2] + x_flat * coefs[3]))
        out = y.astype(dtype).reshape(orig_shape)
    else:
        # Ragged tail (< 128 elements): kernel on the divisible body, JAX on the
        # tail. Avoids a full-array pad copy for a memory-bound kernel.
        body = run_kernel(
            x_flat[:n_body].reshape(n_body // _LANES, _LANES)
        ).reshape(-1)
        tail_x = x_flat[n_body:]
        tail = (
            coefs[0] + tail_x * (coefs[1] + tail_x * (coefs[2] + tail_x * coefs[3]))
        ).astype(dtype)
        out = jnp.concatenate([body, tail]).reshape(orig_shape)

    return out


if __name__ == "__main__":
    key = jax.random.PRNGKey(0)
    kx, ka, kb, kc, kd = jax.random.split(key, 5)

    # Deterministic "randn" scalar parameters (like torch.randn(()))
    a = jax.random.normal(ka, (), dtype=jnp.float32)
    b = jax.random.normal(kb, (), dtype=jnp.float32)
    c = jax.random.normal(kc, (), dtype=jnp.float32)
    d = jax.random.normal(kd, (), dtype=jnp.float32)

    # Small input consistent with the tutorial's usage (1-D sequence of x values)
    N = 2048
    x = jnp.linspace(-jnp.pi, jnp.pi, N, dtype=jnp.float32)

    y = polynomial3(x, a, b, c, d)
    y = jax.block_until_ready(y)

    # Reference check in plain JAX
    y_ref = a + b * x + c * x**2 + d * x**3
    assert jnp.allclose(y, y_ref, rtol=1e-5, atol=1e-5), "mismatch vs reference"

    # Also exercise the ragged-tail path once for correctness (still small).
    x_ragged = jnp.linspace(-1.0, 1.0, 1000, dtype=jnp.float32)
    y_ragged = jax.block_until_ready(polynomial3(x_ragged, a, b, c, d))
    y_ragged_ref = a + b * x_ragged + c * x_ragged**2 + d * x_ragged**3
    assert jnp.allclose(y_ragged, y_ragged_ref, rtol=1e-5, atol=1e-5), "tail mismatch"

    print("KERNEL_OK")
</pallas_src>

<mosaic_0001>
module attributes {stable_mosaic.version = 11 : i64} {
  func.func @_poly3_kernel(%arg0: i32, %arg1: memref<4xf32, #tpu.memory_space<smem>>, %arg2: memref<16x128xf32, #tpu.memory_space<vmem>>, %arg3: memref<16x128xf32, #tpu.memory_space<vmem>>) attributes {dimension_semantics = [#tpu.dimension_semantics<parallel>], iteration_bounds = array<i64: 1>, scalar_prefetch = 0 : i64, scratch_operands = 0 : i64, tpu.core_type = #tpu.core_type<tc>, window_params = [{transform_indices = @transform_0, window_bounds = array<i64: 4>}, {transform_indices = @transform_1, window_bounds = array<i64: 16, 128>}, {transform_indices = @transform_2, window_bounds = array<i64: 16, 128>}]} {
    %c0 = arith.constant 0 : index
    %0 = memref.load %arg1[%c0] : memref<4xf32, #tpu.memory_space<smem>>
    %c1 = arith.constant 1 : index
    %1 = memref.load %arg1[%c1] : memref<4xf32, #tpu.memory_space<smem>>
    %c2 = arith.constant 2 : index
    %2 = memref.load %arg1[%c2] : memref<4xf32, #tpu.memory_space<smem>>
    %c3 = arith.constant 3 : index
    %3 = memref.load %arg1[%c3] : memref<4xf32, #tpu.memory_space<smem>>
    %c0_0 = arith.constant 0 : index
    %c0_1 = arith.constant 0 : index
    %4 = vector.load %arg2[%c0_0, %c0_1] : memref<16x128xf32, #tpu.memory_space<vmem>>, vector<16x128xf32>
    %5 = vector.broadcast %3 : f32 to vector<16x128xf32>
    %6 = arith.mulf %4, %5 : vector<16x128xf32>
    %7 = vector.broadcast %2 : f32 to vector<16x128xf32>
    %8 = arith.addf %7, %6 : vector<16x128xf32>
    %9 = arith.mulf %4, %8 : vector<16x128xf32>
    %10 = vector.broadcast %1 : f32 to vector<16x128xf32>
    %11 = arith.addf %10, %9 : vector<16x128xf32>
    %12 = arith.mulf %4, %11 : vector<16x128xf32>
    %13 = vector.broadcast %0 : f32 to vector<16x128xf32>
    %14 = arith.addf %13, %12 : vector<16x128xf32>
    %c0_2 = arith.constant 0 : index
    %c0_3 = arith.constant 0 : index
    %15 = vector.load %arg3[%c0_2, %c0_3] : memref<16x128xf32, #tpu.memory_space<vmem>>, vector<16x128xf32>
    tpu.vector_store %arg3[%c0_2, %c0_3], %14 {strides = array<i32>} : memref<16x128xf32, #tpu.memory_space<vmem>>, vector<16x128xf32>,
    return
  }
  func.func @transform_0(%arg0: i32) -> i32 {
    %c0_i32 = arith.constant 0 : i32
    %c0_i32_0 = arith.constant 0 : i32
    return %c0_i32 : i32
  }
  func.func @transform_1(%arg0: i32) -> (i32, i32) {
    %c0_i32 = arith.constant 0 : i32
    %c0_i32_0 = arith.constant 0 : i32
    return %arg0, %c0_i32 : i32, i32
  }
  func.func @transform_2(%arg0: i32) -> (i32, i32) {
    %c0_i32 = arith.constant 0 : i32
    %c0_i32_0 = arith.constant 0 : i32
    return %arg0, %c0_i32 : i32, i32
  }
}

</mosaic_0001>

<llo_original>
// kernel: tpu_custom_call.1
$region0: #{tpu_custom_call.1}
  #allocation0 [shape = 'u32[]', space=smem, size = 0x4, offset = 0x4, fixed_abs, tag = 'smem constant byte address 0x4 - core index']
  #allocation1 [shape = 'u32[72,128]{1,0:T(1,128)}', space=vmem, size = 0x9000, scoped, tag = 'internal scratch']
  %s0 = inlined_call_operand.hbm [shape: f32[4], index: 0, kind: input, shape index: {}]
  %s1 = inlined_call_operand.hbm [shape: f32[16,128], index: 1, kind: input, shape index: {}]
  %s2 = inlined_call_operand.hbm [shape: f32[16,128], index: 2, kind: output, shape index: {}]
  %s3 = sld [smem:[#allocation0]]
  $region26: #{tpu_custom_call.1} parent=0
    _
  %s5 = ssub.s32 1, %s3
  %s6 = scalar_select 0, %s5, %s3
  $region1: #{tpu_custom_call.1} parent=0
    #allocation2 [shape = 'u8[512]{0}', space=smem, size = 0x200, scoped, tag = 'input window, operand 0, single buffered']
    #allocation3 [shape = 's32[1]{0}', space=sflag, size = 0x4, scoped, tag = 'scoped memory for tpu_custom_call.1']
    #allocation4 [shape = 's32[1]{0}', space=sflag, size = 0x4, scoped, tag = 'scoped memory for tpu_custom_call.1']
    #allocation5 [shape = 's32[1]{0}', space=sflag, size = 0x4, scoped, tag = 'scoped memory for tpu_custom_call.1']
    #allocation6 [shape = 'u8[8192]{0}', space=vmem, size = 0x2000, scoped, tag = 'input window, operand 1, single buffered']
    #allocation7 [shape = 'u8[8192]{0}', space=vmem, size = 0x2000, scoped, tag = 'output window, operand 0, single buffered']
    %7 = vsyncpa [#allocation5], 0
    %8 = vsyncpa [#allocation3], 0
    %9 = vsyncpa [#allocation4], 0
    // Predicated region
    $region2: #{tpu_custom_call.1} parent=1 // pred_check
      _
    $region3: #{tpu_custom_call.1} parent=1 // pred_check_branch
      %11 = sbr.rel (0) target = $region5
    $region4: #{tpu_custom_call.1} parent=1 // pred_region
      %13 = vsyncadd [#allocation5], 0
      %s15 = sshll.u32 %s0, 4
      %s16 = int_to_ptr.hbm [resolvable:$true] %s15
      %18 = dma.hbm_to_smem %s16, 16, [#allocation2], [#allocation5]
    $region5: #{tpu_custom_call.1} parent=1 // pred_fallthru
      _
    // Predicated region
    $region6: #{tpu_custom_call.1} parent=1 // pred_check
      _
    $region7: #{tpu_custom_call.1} parent=1 // pred_check_branch
      %20 = sbr.rel (0) target = $region9
    $region8: #{tpu_custom_call.1} parent=1 // pred_region
      %22 = vsyncadd [#allocation3], 0
      %s23 = sshll.u32 %s1, 4
      %s24 = int_to_ptr.hbm [resolvable:$true] %s23
      %s25 = sshll.u32 [#allocation6], 4
      %s26 = int_to_ptr.vmem [resolvable:$true] %s25
      %31 = dma.hbm_to_vmem [thread:$0]  %s24, 256, %s26, [#allocation3], 128, 128, 8
    $region9: #{tpu_custom_call.1} parent=1 // pred_fallthru
      _
    // Predicated region
    $region10: #{tpu_custom_call.1} parent=1 // pred_check
      _
    $region11: #{tpu_custom_call.1} parent=1 // pred_check_branch
      %33 = sbr.rel (0) target = $region13
    $region12: #{tpu_custom_call.1} parent=1 // pred_region
      %35 = dma.done [#allocation5], 16
    $region13: #{tpu_custom_call.1} parent=1 // pred_fallthru
      _
    // Predicated region
    $region14: #{tpu_custom_call.1} parent=1 // pred_check
      _
    $region15: #{tpu_custom_call.1} parent=1 // pred_check_branch
      %37 = sbr.rel (0) target = $region17
    $region16: #{tpu_custom_call.1} parent=1 // pred_region
      %39 = dma.done [#allocation3], 256
    $region17: #{tpu_custom_call.1} parent=1 // pred_fallthru
      _
    %40 = sfence
    %s41 = sld [smem:[#allocation2]]
    %s42 = sld [smem:[#allocation2 + $0x1]]
    %s43 = sld [smem:[#allocation2 + $0x2]]
    %s44 = sld [smem:[#allocation2 + $0x3]]
    %v45 = vld [vmem:[#allocation6] sm:$0xff]
    %v46 = vld [vmem:[#allocation6 + $0x8] sm:$0xff]
    %v47 = vstv %s44
    %v48 = vmul.f32 %v45, %v47
    %v49 = vmul.f32 %v46, %v47
    %v50 = vstv %s43
    %v51 = vadd.f32 %v50, %v48
    %v52 = vadd.f32 %v50, %v49
    %v53 = vmul.f32 %v45, %v51
    %v54 = vmul.f32 %v46, %v52
    %v55 = vstv %s42
    %v56 = vadd.f32 %v55, %v53
    %v57 = vadd.f32 %v55, %v54
    %v58 = vmul.f32 %v45, %v56
    %v59 = vmul.f32 %v46, %v57
    %v60 = vstv %s41
    %v61 = vadd.f32 %v60, %v58
    %v62 = vadd.f32 %v60, %v59
    %63 = vst [vmem:[#allocation7] sm:$0xff] %v61
    %64 = vst [vmem:[#allocation7 + $0x8] sm:$0xff] %v62
    // Predicated region
    $region18: #{tpu_custom_call.1} parent=1 // pred_check
      _
    $region19: #{tpu_custom_call.1} parent=1 // pred_check_branch
      %66 = sbr.rel (0) target = $region21
    $region20: #{tpu_custom_call.1} parent=1 // pred_region
      %68 = vsyncadd [#allocation4], 0
      %s69 = sshll.u32 [#allocation7], 4
      %s70 = int_to_ptr.vmem [resolvable:$true] %s69
      %s71 = sshll.u32 %s2, 4
      %s72 = int_to_ptr.hbm [resolvable:$true] %s71
      %77 = dma.vmem_to_hbm [thread:$0]  %s70, 256, %s72, [#allocation4], 128, 128, 8
    $region21: #{tpu_custom_call.1} parent=1 // pred_fallthru
      _
    // Predicated region
    $region22: #{tpu_custom_call.1} parent=1 // pred_check
      _
    $region23: #{tpu_custom_call.1} parent=1 // pred_check_branch
      %79 = sbr.rel (0) target = $region25
    $region24: #{tpu_custom_call.1} parent=1 // pred_region
      %81 = dma.done [#allocation4], 256
    $region25: #{tpu_custom_call.1} parent=1 // pred_fallthru
      _
    %82 = vsyncpa [#allocation3], 1
    %83 = vsyncpa [#allocation4], 1
    %84 = vsyncpa [#allocation5], 1

</llo_original>
